<compile_context>
chip_gen: v5e
topology: v5e:2x2
jax: 0.10.0
libtpu: 0.0.40
codegen_flags: <defaults>
</compile_context>

<pallas_src>
import jax
import jax.numpy as jnp
from jax.experimental import pallas as pl
from jax.experimental.pallas import tpu as pltpu


def _fast_recip(x):
    # EUP approximate reciprocal (perf feedback) + one Newton-Raphson step so the
    # result stays ~f32-exact; the refinement only touches (·, D) elements.
    r = pl.reciprocal(x, approx=True)
    return r * (2.0 - x * r)


# ---------------------------------------------------------------------------
# Single-shot path: whole (B, N, D) problem in one invocation (grid = ()).
# ---------------------------------------------------------------------------
def _attention_pool_small_kernel(x_ref, w_ref, o_ref):
    B, N, D = x_ref.shape
    x = x_ref[...]                                        # native dtype straight to MXU
    logits = jnp.dot(x.reshape(B * N, D), w_ref[...],
                     preferred_element_type=jnp.float32).reshape(B, N, D)
    m = jnp.max(logits, axis=1, keepdims=True)            # (B, 1, D) f32
    p = jnp.exp(logits - m)                               # (B, N, D) f32
    denom = jnp.sum(p, axis=1)                            # (B, D)
    pooled = jnp.sum(x.astype(jnp.float32) * p, axis=1)   # unnormalized pool (B, D)
    # Fold the softmax normalization into the pooled result: D mults, not N*D.
    o_ref[...] = (pooled * _fast_recip(denom)).astype(o_ref.dtype)


def _attention_pool_single_shot(x, w):
    B, N, D = x.shape
    # No grid / BlockSpecs: full arrays brought into VMEM, one kernel invocation.
    return pl.pallas_call(
        _attention_pool_small_kernel,
        out_shape=jax.ShapeDtypeStruct((B, D), x.dtype),
    )(x, w)


# ---------------------------------------------------------------------------
# Tiled path: grid = (B // TB, N // TN) with an online-softmax N reduction.
# ---------------------------------------------------------------------------
def _attention_pool_tiled_kernel(x_ref, w_ref, o_ref, m_acc, d_acc, p_acc):
    n_idx = pl.program_id(1)
    TB, TN, D = x_ref.shape

    @pl.when(n_idx == 0)
    def _():
        m_acc[...] = jnp.full(m_acc.shape, -jnp.inf, dtype=jnp.float32)
        d_acc[...] = jnp.zeros(d_acc.shape, dtype=jnp.float32)
        p_acc[...] = jnp.zeros(p_acc.shape, dtype=jnp.float32)

    x = x_ref[...]                                        # (TB, TN, D), native dtype
    # One (TB*TN, D) @ (D, D) MXU call per step; f32 accumulation on the MXU.
    logits = jnp.dot(x.reshape(TB * TN, D), w_ref[...],
                     preferred_element_type=jnp.float32).reshape(TB, TN, D)

    m_prev = m_acc[...]                                   # (TB, D)
    m_new = jnp.maximum(m_prev, jnp.max(logits, axis=1))  # (TB, D)
    alpha = jnp.exp(m_prev - m_new)                       # rescale old accumulators
    p = jnp.exp(logits - m_new[:, None, :])               # (TB, TN, D) f32

    d_acc[...] = alpha * d_acc[...] + jnp.sum(p, axis=1)
    p_acc[...] = alpha * p_acc[...] + jnp.sum(x.astype(jnp.float32) * p, axis=1)
    m_acc[...] = m_new

    @pl.when(n_idx == pl.num_programs(1) - 1)
    def _():
        o_ref[...] = (p_acc[...] * _fast_recip(d_acc[...])).astype(o_ref.dtype)


def _largest_divisor_at_most(n, cap, multiple_of=1):
    for t in range(min(n, cap), 0, -1):
        if n % t == 0 and t % multiple_of == 0:
            return t
    return None


def attention_pool_tiled(x, w, *, tb=None, tn=None):
    """x: (B, N, D), w: (D, D) -> (B, D). Online-softmax over N, batched over B."""
    B, N, D = x.shape
    if tb is None:
        tb = _largest_divisor_at_most(B, 8)               # >= 8 rows/step when possible
    if tn is None:
        tn = _largest_divisor_at_most(N, min(N, 512), multiple_of=8) or N
    grid = (B // tb, N // tn)
    # NOTE: for very large N*D on v5e/v6e, raise vmem_limit_bytes via
    # pltpu.CompilerParams and grow tn; keep tn smaller on v7x (64 MiB VMEM).
    return pl.pallas_call(
        _attention_pool_tiled_kernel,
        out_shape=jax.ShapeDtypeStruct((B, D), x.dtype),
        grid_spec=pltpu.PrefetchScalarGridSpec(
            num_scalar_prefetch=0,
            grid=grid,
            in_specs=[
                pl.BlockSpec((tb, tn, D), lambda b, n: (b, n, 0)),
                pl.BlockSpec((D, D), lambda b, n: (0, 0)),
            ],
            out_specs=pl.BlockSpec((tb, D), lambda b, n: (b, 0)),
            scratch_shapes=[
                pltpu.VMEM((tb, D), jnp.float32),          # running max
                pltpu.VMEM((tb, D), jnp.float32),          # running softmax denom
                pltpu.VMEM((tb, D), jnp.float32),          # running pooled sum
            ],
        ),
        compiler_params=pltpu.CompilerParams(
            dimension_semantics=("parallel", "arbitrary"),
        ),
    )(x, w)


def attention_pool(x, w):
    """x: (B, N, D), w: (D, D) -> (B, D) (matches torch .squeeze() for B > 1)."""
    B, N, D = x.shape
    # Rough VMEM footprint of the single-shot path (x native + f32 logits/p + W).
    single_shot_bytes = B * N * D * (x.dtype.itemsize + 8) + D * D * w.dtype.itemsize
    if single_shot_bytes <= 4 * 1024 * 1024:
        out = _attention_pool_single_shot(x, w)
    else:
        out = attention_pool_tiled(x, w)
    # torch's final .squeeze(): (B, 1, D) -> (B, D); drops B too if B == 1.
    return jnp.squeeze(out) if B == 1 else out


def attention_pool_reference(x, w):
    logits = jnp.einsum("bnd,de->bne", x, w)
    attn = jax.nn.softmax(logits, axis=1)
    return jnp.sum(x * attn, axis=1)


if __name__ == "__main__":
    key = jax.random.PRNGKey(0)
    k_small, k_big = jax.random.split(key)

    # --- small shapes consistent with the module: batch=2, seq=8, dim=32 ---
    B, N, D = 2, 8, 32
    x = jax.random.normal(k_small, (B, N, D), dtype=jnp.float32)
    w = jnp.eye(D, dtype=jnp.float32)        # module init: torch.eye(dim)

    out = jax.block_until_ready(attention_pool(x, w))
    ref = attention_pool_reference(x, w)
    assert out.shape == (B, D)
    assert jnp.allclose(out, ref, atol=1e-4, rtol=1e-4), "small-path mismatch"

    # --- exercise the tiled / online-softmax path (bf16 inputs, f32 softmax) ---
    B2, N2, D2 = 16, 256, 128
    x2 = jax.random.normal(k_big, (B2, N2, D2), dtype=jnp.bfloat16)
    w2 = jnp.eye(D2, dtype=jnp.bfloat16)
    out2 = jax.block_until_ready(attention_pool_tiled(x2, w2, tb=8, tn=64))
    ref2 = attention_pool_reference(x2.astype(jnp.float32), w2.astype(jnp.float32))
    assert out2.shape == (B2, D2)
    assert jnp.allclose(out2.astype(jnp.float32), ref2, atol=2e-2, rtol=2e-2), \
        "tiled-path mismatch"

    print("KERNEL_OK")
</pallas_src>

<mosaic_0001>
module attributes {stable_mosaic.version = 11 : i64} {
  func.func @_attention_pool_small_kernel(%arg0: memref<2x8x32xf32, #tpu.memory_space<vmem>>, %arg1: memref<32x32xf32, #tpu.memory_space<vmem>>, %arg2: memref<2x32xf32, #tpu.memory_space<vmem>>) attributes {dimension_semantics = [], scalar_prefetch = 0 : i64, scratch_operands = 0 : i64, tpu.core_type = #tpu.core_type<tc>} {
    %c0 = arith.constant 0 : index
    %c0_0 = arith.constant 0 : index
    %c0_1 = arith.constant 0 : index
    %0 = vector.load %arg0[%c0, %c0_0, %c0_1] : memref<2x8x32xf32, #tpu.memory_space<vmem>>, vector<2x8x32xf32>
    %1 = vector.shape_cast %0 : vector<2x8x32xf32> to vector<16x32xf32>
    %c0_2 = arith.constant 0 : index
    %c0_3 = arith.constant 0 : index
    %2 = vector.load %arg1[%c0_2, %c0_3] : memref<32x32xf32, #tpu.memory_space<vmem>>, vector<32x32xf32>
    %cst = arith.constant dense<0.000000e+00> : vector<16x32xf32>
    %3 = tpu.matmul %1, %2, %cst {dimension_numbers = #tpu.dot_dimension_numbers<[1], [0], [0], [1], [0, 0, 1, 1], [], []>} : vector<16x32xf32>, vector<32x32xf32>, vector<16x32xf32> -> vector<16x32xf32>
    %4 = vector.shape_cast %3 : vector<16x32xf32> to vector<2x8x32xf32>
    %cst_4 = arith.constant dense<0xFF800000> : vector<2x32xf32>
    %5 = vector.multi_reduction <maximumf>, %4, %cst_4 [1] : vector<2x8x32xf32> to vector<2x32xf32>
    %6 = vector.shape_cast %5 : vector<2x32xf32> to vector<2x1x32xf32>
    %7 = vector.broadcast %6 : vector<2x1x32xf32> to vector<2x8x32xf32>
    %8 = arith.subf %4, %7 : vector<2x8x32xf32>
    %9 = math.exp %8 : vector<2x8x32xf32>
    %cst_5 = arith.constant dense<0.000000e+00> : vector<2x32xf32>
    %10 = vector.multi_reduction <add>, %9, %cst_5 [1] : vector<2x8x32xf32> to vector<2x32xf32>
    %11 = arith.mulf %0, %9 : vector<2x8x32xf32>
    %cst_6 = arith.constant dense<0.000000e+00> : vector<2x32xf32>
    %12 = vector.multi_reduction <add>, %11, %cst_6 [1] : vector<2x8x32xf32> to vector<2x32xf32>
    %13 = tpu.reciprocal %10 {approx = true} : vector<2x32xf32> -> vector<2x32xf32>
    %14 = arith.mulf %10, %13 : vector<2x32xf32>
    %cst_7 = arith.constant 2.000000e+00 : f32
    %15 = vector.broadcast %cst_7 : f32 to vector<2x32xf32>
    %16 = arith.subf %15, %14 : vector<2x32xf32>
    %17 = arith.mulf %13, %16 : vector<2x32xf32>
    %18 = arith.mulf %12, %17 : vector<2x32xf32>
    %c0_8 = arith.constant 0 : index
    %c0_9 = arith.constant 0 : index
    %19 = vector.load %arg2[%c0_8, %c0_9] : memref<2x32xf32, #tpu.memory_space<vmem>>, vector<2x32xf32>
    tpu.vector_store %arg2[%c0_8, %c0_9], %18 {strides = array<i32>} : memref<2x32xf32, #tpu.memory_space<vmem>>, vector<2x32xf32>,
    return
  }
}

</mosaic_0001>

<llo_original>
// kernel: tpu_custom_call.1
$region0: #{tpu_custom_call.1}
  #allocation0 [shape = 'u32[]', space=smem, size = 0x4, offset = 0x4, fixed_abs, tag = 'smem constant byte address 0x4 - core index']
  #allocation1 [shape = 'u32[72,128]{1,0:T(1,128)}', space=vmem, size = 0x9000, scoped, tag = 'internal scratch']
  %s0 = inlined_call_operand.hbm [shape: f32[2,8,32], index: 0, kind: input, shape index: {}]
  %s1 = inlined_call_operand.hbm [shape: f32[32,32], index: 1, kind: input, shape index: {}]
  %s2 = inlined_call_operand.hbm [shape: f32[2,32], index: 2, kind: output, shape index: {}]
  %s3 = sld [smem:[#allocation0]]
  $region26: #{tpu_custom_call.1} parent=0
    _
  %s5 = ssub.s32 1, %s3
  %s6 = scalar_select 0, %s5, %s3
  $region1: #{tpu_custom_call.1} parent=0
    #allocation2 [shape = 'u8[8192]{0}', space=vmem, size = 0x2000, scoped, tag = 'input window, operand 0, single buffered']
    #allocation3 [shape = 's32[1]{0}', space=sflag, size = 0x4, scoped, tag = 'scoped memory for tpu_custom_call.1']
    #allocation4 [shape = 's32[1]{0}', space=sflag, size = 0x4, scoped, tag = 'scoped memory for tpu_custom_call.1']
    #allocation5 [shape = 'u8[16384]{0}', space=vmem, size = 0x4000, scoped, tag = 'input window, operand 1, single buffered']
    #allocation6 [shape = 's32[1]{0}', space=sflag, size = 0x4, scoped, tag = 'scoped memory for tpu_custom_call.1']
    #allocation7 [shape = 'u8[1024]{0}', space=vmem, size = 0x400, scoped, tag = 'output window, operand 0, single buffered']
    %7 = vsyncpa [#allocation3], 0
    %8 = vsyncpa [#allocation6], 0
    %9 = vsyncpa [#allocation4], 0
    // Predicated region
    $region2: #{tpu_custom_call.1} parent=1 // pred_check
      _
    $region3: #{tpu_custom_call.1} parent=1 // pred_check_branch
      %11 = sbr.rel (0) target = $region5
    $region4: #{tpu_custom_call.1} parent=1 // pred_region
      %13 = vsyncadd [#allocation3], 0
      %s14 = sshll.u32 %s0, 4
      %s15 = int_to_ptr.hbm [resolvable:$true] %s14
      %s16 = sshll.u32 [#allocation2], 4
      %s17 = int_to_ptr.vmem [resolvable:$true] %s16
      %22 = dma.hbm_to_vmem [thread:$0]  %s15, 256, %s17, [#allocation3], 128, 128, 8
    $region5: #{tpu_custom_call.1} parent=1 // pred_fallthru
      _
    // Predicated region
    $region6: #{tpu_custom_call.1} parent=1 // pred_check
      _
    $region7: #{tpu_custom_call.1} parent=1 // pred_check_branch
      %24 = sbr.rel (0) target = $region9
    $region8: #{tpu_custom_call.1} parent=1 // pred_region
      %26 = vsyncadd [#allocation6], 0
      %s27 = sshll.u32 %s1, 4
      %s28 = int_to_ptr.hbm [resolvable:$true] %s27
      %s29 = sshll.u32 [#allocation5], 4
      %s30 = int_to_ptr.vmem [resolvable:$true] %s29
      %35 = dma.hbm_to_vmem [thread:$0]  %s28, 512, %s30, [#allocation6], 128, 128, 8
    $region9: #{tpu_custom_call.1} parent=1 // pred_fallthru
      _
    // Predicated region
    $region10: #{tpu_custom_call.1} parent=1 // pred_check
      _
    $region11: #{tpu_custom_call.1} parent=1 // pred_check_branch
      %37 = sbr.rel (0) target = $region13
    $region12: #{tpu_custom_call.1} parent=1 // pred_region
      %39 = dma.done [#allocation3], 256
    $region13: #{tpu_custom_call.1} parent=1 // pred_fallthru
      _
    // Predicated region
    $region14: #{tpu_custom_call.1} parent=1 // pred_check
      _
    $region15: #{tpu_custom_call.1} parent=1 // pred_check_branch
      %41 = sbr.rel (0) target = $region17
    $region16: #{tpu_custom_call.1} parent=1 // pred_region
      %43 = dma.done [#allocation6], 512
    $region17: #{tpu_custom_call.1} parent=1 // pred_fallthru
      _
    %v44 = vld [vmem:[#allocation2] sm:$0xff]
    %v45 = vld [vmem:[#allocation2 + $0x8] sm:$0xff]
    %v46 = vld [vmem:[#allocation5] sm:$0xff]
    %v47 = vld [vmem:[#allocation5 + $0x8] sm:$0xff]
    %v48 = vld [vmem:[#allocation5 + $0x10] sm:$0xff]
    %v49 = vld [vmem:[#allocation5 + $0x18] sm:$0xff]
    %vm50 = vcmask 261120
    %v52 = vsel %vm50, %v44, 0
    %v55 = vsel %vm50, %v45, 0
    %57 = vmatpush.msra.mxu0 0.0
    %58 = vmatpush.msra.mxu0 0.0
    %59 = vmatpush.msra.mxu0 0.0
    %60 = vmatpush.msra.mxu0 0.0
    %61 = vmatpush.msra.mxu0 0.0
    %62 = vmatpush.msra.mxu0 0.0
    %63 = vmatpush.msra.mxu0 0.0
    %64 = vmatpush.msra.mxu0 0.0
    %65 = vmatpush.msra.mxu0 0.0
    %66 = vmatpush.msra.mxu0 0.0
    %67 = vmatpush.msra.mxu0 0.0
    %68 = vmatpush.msra.mxu0 0.0
    %69 = vmatpush.msra.mxu0 %v49
    %70 = vmatpush.msra.mxu0 %v48
    %71 = vmatpush.msra.mxu0 %v47
    %72 = vmatpush.msra.mxu0 %v46
    %73 = vmatmul.f32.gmra.mxu0 %v52
    %v74 = vpop.f32.mrf.mxu0
    %v75 = vadd.f32 0.0, %v74
    %76 = vmatmul.f32.gmra.mxu0 %v55
    %v77 = vpop.f32.mrf.mxu0
    %v78 = vadd.f32 0.0, %v77
    %79 = vdwg.mxu0
    %v80 = vsel %vm50, %v75, -inf
    %v81 = vrot.slane %v80, 4
    %v82 = vmax.f32 %v80, %v81
    %v83 = vrot.slane %v82, 2
    %v84 = vmax.f32 %v82, %v83
    %v85 = vrot.slane %v84, 1
    %v86 = vmax.f32 %v84, %v85
    %v87 = vsel %vm50, %v78, -inf
    %v88 = vrot.slane %v87, 4
    %v89 = vmax.f32 %v87, %v88
    %v90 = vrot.slane %v89, 2
    %v91 = vmax.f32 %v89, %v90
    %v92 = vrot.slane %v91, 1
    %v93 = vmax.f32 %v91, %v92
    %v94 = vsub.f32 %v75, %v86
    %v95 = vsub.f32 %v78, %v93
    %v96 = vmul.f32 %v94, 1.442695
    %v97 = vpow.pop %v96
    %v98 = vmul.f32 %v95, 1.442695
    %v99 = vpow.pop %v98
    %v100 = vsel %vm50, %v97, 0.0
    %v101 = vrot.slane %v100, 4
    %v102 = vadd.f32 %v100, %v101
    %v103 = vrot.slane %v102, 2
    %v104 = vadd.f32 %v102, %v103
    %v105 = vrot.slane %v104, 1
    %v106 = vadd.f32 %v104, %v105
    %v107 = vsel %vm50, %v99, 0.0
    %v108 = vrot.slane %v107, 4
    %v109 = vadd.f32 %v107, %v108
    %v110 = vrot.slane %v109, 2
    %v111 = vadd.f32 %v109, %v110
    %v112 = vrot.slane %v111, 1
    %v113 = vadd.f32 %v111, %v112
    %v114 = vmul.f32 %v44, %v97
    %v115 = vmul.f32 %v45, %v99
    %v116 = vsel %vm50, %v114, 0.0
    %v117 = vrot.slane %v116, 4
    %v118 = vadd.f32 %v116, %v117
    %v119 = vrot.slane %v118, 2
    %v120 = vadd.f32 %v118, %v119
    %v121 = vrot.slane %v120, 1
    %v122 = vadd.f32 %v120, %v121
    %v123 = vsel %vm50, %v115, 0.0
    %v124 = vrot.slane %v123, 4
    %v125 = vadd.f32 %v123, %v124
    %v126 = vrot.slane %v125, 2
    %v127 = vadd.f32 %v125, %v126
    %v128 = vrot.slane %v127, 1
    %v129 = vadd.f32 %v127, %v128
    %v130 = vrcp.pop %v106
    %v131 = vrcp.pop %v113
    %v132 = vmul.f32 %v106, %v130
    %v133 = vmul.f32 %v113, %v131
    %v134 = vsub.f32 2.0, %v132
    %v135 = vsub.f32 2.0, %v133
    %v136 = vmul.f32 %v130, %v134
    %v137 = vmul.f32 %v131, %v135
    %v138 = vmul.f32 %v122, %v136
    %v139 = vmul.f32 %v129, %v137
    %vm142 = vcmask 1041409
    %v143 = vsel %vm142, %v139, %v138
    %vm145 = vcmask 254976
    %146 = vst.msk [vmem:[#allocation7] sm:$0x3] %vm145, %v143
    // Predicated region
    $region18: #{tpu_custom_call.1} parent=1 // pred_check
      _
    $region19: #{tpu_custom_call.1} parent=1 // pred_check_branch
      %148 = sbr.rel (0) target = $region21
    $region20: #{tpu_custom_call.1} parent=1 // pred_region
      %150 = vsyncadd [#allocation4], 0
      %s152 = sshll.u32 [#allocation7], 4
      %s153 = int_to_ptr.vmem [resolvable:$true] %s152
      %s154 = sshll.u32 %s2, 4
      %s155 = int_to_ptr.hbm [resolvable:$true] %s154
      %157 = dma.vmem_to_hbm [thread:$0]  %s153, 32, %s155, [#allocation4]
    $region21: #{tpu_custom_call.1} parent=1 // pred_fallthru
      _
    // Predicated region
    $region22: #{tpu_custom_call.1} parent=1 // pred_check
      _
    $region23: #{tpu_custom_call.1} parent=1 // pred_check_branch
      %159 = sbr.rel (0) target = $region25
    $region24: #{tpu_custom_call.1} parent=1 // pred_region
      %161 = dma.done [#allocation4], 32
    $region25: #{tpu_custom_call.1} parent=1 // pred_fallthru
      _
    %162 = vsyncpa [#allocation3], 1
    %163 = vsyncpa [#allocation6], 1
    %164 = vsyncpa [#allocation4], 1

</llo_original>
